<compile_context>
chip_gen: v5e
topology: v5e:2x2
jax: 0.10.0
libtpu: 0.0.40
codegen_flags: <defaults>
</compile_context>

<pallas_src>
import functools

import jax
import jax.numpy as jnp
from jax.experimental import pallas as pl
from jax.experimental.pallas import tpu as pltpu

ENCODER_REGULAR_VTH = 0.999


def _round_up(x, m):
    return -(-x // m) * m


def _vmem_capacity_bytes():
    """Physical VMEM per TensorCore; conservative fallback = v7x (64 MiB)."""
    try:
        info = pltpu.get_tpu_info()
        cap = int(getattr(info, "vmem_capacity_bytes", 0) or 0)
        if cap > 0:
            return cap
    except Exception:
        pass
    return 64 * 1024 * 1024


def _pop_spike_encoder_kernel(obs_ref, expand_ref, mean_ref, coef_ref, out_ref,
                              *, spike_ts):
    """Population coding + regular spike train for one (b_tile, n_tile) tile.

    obs_ref   : (b_tile, obs_dim) f32   raw observations (NOT pre-repeated)
    expand_ref: (obs_dim, n_tile) f32   one-hot obs -> neuron expansion matrix
    mean_ref  : (1, n_tile) f32         per-neuron means
    coef_ref  : (1, n_tile) f32         per-neuron -0.5 / std^2 (precomputed)
    out_ref   : (spike_ts, b_tile, n_tile)  spikes, values exactly {0, 1}
    """
    # Broadcast obs along pop_dim on the otherwise-idle MXU. One-hot columns
    # make this exact under HIGHEST precision (bit-identical to a repeat).
    obs_b = jnp.dot(obs_ref[...], expand_ref[...],
                    precision=jax.lax.Precision.HIGHEST,
                    preferred_element_type=jnp.float32)          # (b_tile, n_tile)
    diff = obs_b - mean_ref[...]
    pop_act = jnp.exp(diff * diff * coef_ref[...])               # (b_tile, n_tile)

    volt = jnp.zeros_like(pop_act)
    # spike_ts is small & static -> Python unroll keeps the volt chain visible.
    # Each timestep is stored immediately as a dense, unmasked 2-D slab.
    for t in range(spike_ts):
        volt = volt + pop_act
        fire = volt > ENCODER_REGULAR_VTH
        out_ref[t] = fire.astype(out_ref.dtype)
        volt = jnp.where(fire, volt - ENCODER_REGULAR_VTH, volt)


def pop_spike_encoder_regular_spike(
    obs,
    mean,
    std,
    spike_ts,
    *,
    out_dtype=jnp.bfloat16,
    torch_layout=True,
    block_b=None,
    block_n=None,
):
    """JAX wrapper.

    obs : (B, obs_dim) f32
    mean: (1, obs_dim, pop_dim) f32
    std : (1, obs_dim, pop_dim) f32

    Returns spikes with values in {0, 1} (out_dtype may be bf16/f32/int8):
      torch_layout=True  -> (B, obs_dim*pop_dim, spike_ts)  (PyTorch convention)
      torch_layout=False -> (spike_ts, B, obs_dim*pop_dim)  (kernel-native,
                            lane-dense slabs; no transpose pass at all)
    """
    B, obs_dim = obs.shape
    pop_dim = mean.shape[-1]
    N = obs_dim * pop_dim
    T = int(spike_ts)

    out_bytes = jnp.dtype(out_dtype).itemsize
    sub = max(8, 32 // out_bytes)          # sublane packing of the output dtype

    # ---- parameter plumbing (per-neuron rows, computed BEFORE padding so the
    # padded columns carry 0 (pop_act=1) rather than NaN) ----------------------
    obs_f = obs.astype(jnp.float32)
    mean_e = mean.reshape(1, N).astype(jnp.float32)
    std_e = std.reshape(1, N).astype(jnp.float32)
    coef = -0.5 / (std_e * std_e)

    # ---- tile selection (generation-aware VMEM budget) -----------------------
    vmem_cap = _vmem_capacity_bytes()
    budget = min(vmem_cap // 3, 40 * 1024 * 1024)

    if block_n is None:
        n_tile = min(_round_up(N, 128), 2048)
    else:
        n_tile = max(128, _round_up(int(block_n), 128))
    n_pad = _round_up(N, n_tile)

    # Double-buffered pipeline blocks + ~4 live f32 temporaries per batch row.
    fixed = 2 * obs_dim * n_tile * 4 + 2 * 2 * n_tile * 4
    per_row = 2 * T * n_tile * out_bytes + 2 * obs_dim * 4 + 4 * n_tile * 4
    if block_b is None:
        b_cap = (budget - fixed) // max(per_row, 1)
        b_cap = max(sub, min(512, (b_cap // sub) * sub))
    else:
        b_cap = max(sub, _round_up(int(block_b), sub))
    b_tile = _round_up(B, sub) if B <= b_cap else b_cap
    b_pad = _round_up(B, b_tile)

    # v7x has 2 TensorCores: ensure >=2 blocks on a 'parallel' axis when the
    # problem size allows it, so one core isn't idle. No effect on v5e/v6e.
    if (n_pad // n_tile) * (b_pad // b_tile) == 1:
        if n_tile >= 256:
            n_tile //= 2
            n_pad = _round_up(N, n_tile)
        elif b_tile >= 2 * sub:
            b_tile = _round_up(b_tile // 2, sub)
            b_pad = _round_up(B, b_tile)

    # ---- padding (inputs only; tiny vs the T-times-larger output) ------------
    if b_pad != B:
        obs_f = jnp.pad(obs_f, ((0, b_pad - B), (0, 0)))
    if n_pad != N:
        mean_e = jnp.pad(mean_e, ((0, 0), (0, n_pad - N)))
        coef = jnp.pad(coef, ((0, 0), (0, n_pad - N)))

    # One-hot expansion: column j belongs to obs index j // pop_dim; padded
    # columns map nowhere -> all-zero column -> results sliced off below.
    col_src = jnp.arange(n_pad, dtype=jnp.int32) // pop_dim
    expand = (jnp.arange(obs_dim, dtype=jnp.int32)[:, None] == col_src[None, :]
              ).astype(jnp.float32)                               # (obs_dim, n_pad)

    # Grid order (n, b): b iterates fastest, so the (0, n)-indexed parameter
    # and expansion blocks stay resident while the batch axis sweeps.
    grid = (n_pad // n_tile, b_pad // b_tile)
    kernel = functools.partial(_pop_spike_encoder_kernel, spike_ts=T)

    vmem_limit = max(32 * 1024 * 1024,
                     min(vmem_cap - 16 * 1024 * 1024, 96 * 1024 * 1024))

    out = pl.pallas_call(
        kernel,
        out_shape=jax.ShapeDtypeStruct((T, b_pad, n_pad), out_dtype),
        grid_spec=pltpu.PrefetchScalarGridSpec(
            num_scalar_prefetch=0,
            grid=grid,
            in_specs=[
                pl.BlockSpec((b_tile, obs_dim), lambda n, b: (b, 0)),
                pl.BlockSpec((obs_dim, n_tile), lambda n, b: (0, n)),
                pl.BlockSpec((1, n_tile), lambda n, b: (0, n)),
                pl.BlockSpec((1, n_tile), lambda n, b: (0, n)),
            ],
            out_specs=pl.BlockSpec((T, b_tile, n_tile), lambda n, b: (0, b, n)),
        ),
        compiler_params=pltpu.CompilerParams(
            dimension_semantics=("parallel", "parallel"),
            vmem_limit_bytes=vmem_limit,
        ),
    )(obs_f, expand, mean_e, coef)

    out = out[:, :B, :N]                          # strip padding -> (T, B, N)
    if torch_layout:
        # PyTorch module convention (B, N, T); done once, on the narrow dtype.
        out = jnp.transpose(out, (1, 2, 0))
    return out


def make_params(obs_dim, pop_dim, mean_range, std):
    """Deterministic parameter init, exactly as in the PyTorch __init__."""
    delta_mean = (mean_range[1] - mean_range[0]) / (pop_dim - 1)
    means = mean_range[0] + delta_mean * jnp.arange(pop_dim, dtype=jnp.float32)
    mean = jnp.broadcast_to(means[None, None, :], (1, obs_dim, pop_dim))
    std_p = jnp.full((1, obs_dim, pop_dim), std, dtype=jnp.float32)
    return mean, std_p


def _reference(obs, mean, std, spike_ts):
    """Pure-JAX reference mirroring the PyTorch forward. Returns (B, N, T) f32."""
    B, obs_dim = obs.shape
    pop_dim = mean.shape[-1]
    N = obs_dim * pop_dim
    o = obs.reshape(B, obs_dim, 1).astype(jnp.float32)
    pop_act = jnp.exp(-0.5 * (o - mean) ** 2 / std**2).reshape(B, N)
    volt = jnp.zeros((B, N), jnp.float32)
    spikes = []
    for _ in range(spike_ts):
        volt = volt + pop_act
        s = (volt > ENCODER_REGULAR_VTH).astype(jnp.float32)
        spikes.append(s)
        volt = volt - s * ENCODER_REGULAR_VTH
    return jnp.stack(spikes, axis=-1)


# TODO(synk): PseudoEncoderSpikeRegular's surrogate backward (straight-through
# gradient) is not implemented; this kernel covers the forward pass only.

if __name__ == "__main__":
    mean_range, std = (-3.0, 3.0), 0.15

    # Case 1: N exactly one lane tile, PyTorch output layout (B, N, T).
    batch, obs_dim, pop_dim, spike_ts = 2, 4, 32, 8
    obs = jax.random.normal(jax.random.PRNGKey(0), (batch, obs_dim), dtype=jnp.float32)
    mean_p, std_p = make_params(obs_dim, pop_dim, mean_range, std)
    out = jax.block_until_ready(
        pop_spike_encoder_regular_spike(obs, mean_p, std_p, spike_ts)
    )
    ref = _reference(obs, mean_p, std_p, spike_ts)
    assert out.shape == (batch, obs_dim * pop_dim, spike_ts)
    assert jnp.allclose(out.astype(jnp.float32), ref), "case1 mismatch"

    # Case 2: N not a multiple of 128 (padded), odd batch, kernel-native (T,B,N).
    b2, od2, pd2, ts2 = 5, 11, 10, 5
    obs2 = jax.random.normal(jax.random.PRNGKey(1), (b2, od2), dtype=jnp.float32)
    m2, s2 = make_params(od2, pd2, mean_range, std)
    out2 = jax.block_until_ready(
        pop_spike_encoder_regular_spike(obs2, m2, s2, ts2, torch_layout=False)
    )
    ref2 = _reference(obs2, m2, s2, ts2)
    assert out2.shape == (ts2, b2, od2 * pd2)
    assert jnp.allclose(
        jnp.transpose(out2, (1, 2, 0)).astype(jnp.float32), ref2
    ), "case2 mismatch"

    # Case 3: forced batch tiling (multi-block grid along the batch axis).
    b3 = 40
    obs3 = jax.random.normal(jax.random.PRNGKey(2), (b3, obs_dim), dtype=jnp.float32)
    out3 = jax.block_until_ready(
        pop_spike_encoder_regular_spike(obs3, mean_p, std_p, spike_ts, block_b=16)
    )
    ref3 = _reference(obs3, mean_p, std_p, spike_ts)
    assert jnp.allclose(out3.astype(jnp.float32), ref3), "case3 mismatch"

    print("KERNEL_OK")
</pallas_src>

<mosaic_0001>
module attributes {stable_mosaic.version = 11 : i64} {
  func.func @_pop_spike_encoder_kernel(%arg0: i32, %arg1: i32, %arg2: memref<16x4xf32, #tpu.memory_space<vmem>>, %arg3: memref<4x128xf32, #tpu.memory_space<vmem>>, %arg4: memref<1x128xf32, #tpu.memory_space<vmem>>, %arg5: memref<1x128xf32, #tpu.memory_space<vmem>>, %arg6: memref<8x16x128xbf16, #tpu.memory_space<vmem>>) attributes {dimension_semantics = [#tpu.dimension_semantics<parallel>, #tpu.dimension_semantics<parallel>], iteration_bounds = array<i64: 1, 1>, scalar_prefetch = 0 : i64, scratch_operands = 0 : i64, tpu.core_type = #tpu.core_type<tc>, window_params = [{transform_indices = @transform_0, window_bounds = array<i64: 16, 4>}, {transform_indices = @transform_1, window_bounds = array<i64: 4, 128>}, {transform_indices = @transform_2, window_bounds = array<i64: 1, 128>}, {transform_indices = @transform_3, window_bounds = array<i64: 1, 128>}, {transform_indices = @transform_4, window_bounds = array<i64: 8, 16, 128>}]} {
    %c0 = arith.constant 0 : index
    %c0_0 = arith.constant 0 : index
    %0 = vector.load %arg2[%c0, %c0_0] : memref<16x4xf32, #tpu.memory_space<vmem>>, vector<16x4xf32>
    %c0_1 = arith.constant 0 : index
    %c0_2 = arith.constant 0 : index
    %1 = vector.load %arg3[%c0_1, %c0_2] : memref<4x128xf32, #tpu.memory_space<vmem>>, vector<4x128xf32>
    %cst = arith.constant dense<0.000000e+00> : vector<16x128xf32>
    %2 = tpu.matmul %0, %1, %cst {dimension_numbers = #tpu.dot_dimension_numbers<[1], [0], [0], [1], [0, 0, 1, 1], [], []>, precision = #tpu.contract_precision<fp32>} : vector<16x4xf32>, vector<4x128xf32>, vector<16x128xf32> -> vector<16x128xf32>
    %c0_3 = arith.constant 0 : index
    %c0_4 = arith.constant 0 : index
    %3 = vector.load %arg4[%c0_3, %c0_4] : memref<1x128xf32, #tpu.memory_space<vmem>>, vector<1x128xf32>
    %4 = vector.broadcast %3 : vector<1x128xf32> to vector<16x128xf32>
    %5 = arith.subf %2, %4 : vector<16x128xf32>
    %6 = arith.mulf %5, %5 : vector<16x128xf32>
    %c0_5 = arith.constant 0 : index
    %c0_6 = arith.constant 0 : index
    %7 = vector.load %arg5[%c0_5, %c0_6] : memref<1x128xf32, #tpu.memory_space<vmem>>, vector<1x128xf32>
    %8 = vector.broadcast %7 : vector<1x128xf32> to vector<16x128xf32>
    %9 = arith.mulf %6, %8 : vector<16x128xf32>
    %10 = math.exp %9 : vector<16x128xf32>
    %cst_7 = arith.constant 0.000000e+00 : f32
    %11 = vector.broadcast %cst_7 : f32 to vector<16x128xf32>
    %12 = arith.addf %11, %10 : vector<16x128xf32>
    %cst_8 = arith.constant 9.990000e-01 : f32
    %13 = vector.broadcast %cst_8 : f32 to vector<16x128xf32>
    %14 = arith.cmpf ogt, %12, %13 : vector<16x128xf32>
    %15 = arith.extui %14 : vector<16x128xi1> to vector<16x128xi32>
    %16 = arith.sitofp %15 : vector<16x128xi32> to vector<16x128xf32>
    %17 = arith.truncf %16 : vector<16x128xf32> to vector<16x128xbf16>
    %c0_9 = arith.constant 0 : index
    %c0_10 = arith.constant 0 : index
    %c0_11 = arith.constant 0 : index
    %18 = vector.load %arg6[%c0_9, %c0_10, %c0_11] : memref<8x16x128xbf16, #tpu.memory_space<vmem>>, vector<1x16x128xbf16>
    %19 = vector.shape_cast %18 : vector<1x16x128xbf16> to vector<16x128xbf16>
    %20 = vector.shape_cast %17 : vector<16x128xbf16> to vector<1x16x128xbf16>
    tpu.vector_store %arg6[%c0_9, %c0_10, %c0_11], %20 {strides = array<i32>} : memref<8x16x128xbf16, #tpu.memory_space<vmem>>, vector<1x16x128xbf16>,
    %cst_12 = arith.constant 9.990000e-01 : f32
    %21 = vector.broadcast %cst_12 : f32 to vector<16x128xf32>
    %22 = arith.subf %12, %21 : vector<16x128xf32>
    %23 = arith.select %14, %22, %12 : vector<16x128xi1>, vector<16x128xf32>
    %24 = arith.addf %23, %10 : vector<16x128xf32>
    %cst_13 = arith.constant 9.990000e-01 : f32
    %25 = vector.broadcast %cst_13 : f32 to vector<16x128xf32>
    %26 = arith.cmpf ogt, %24, %25 : vector<16x128xf32>
    %27 = arith.extui %26 : vector<16x128xi1> to vector<16x128xi32>
    %28 = arith.sitofp %27 : vector<16x128xi32> to vector<16x128xf32>
    %29 = arith.truncf %28 : vector<16x128xf32> to vector<16x128xbf16>
    %c1 = arith.constant 1 : index
    %c0_14 = arith.constant 0 : index
    %c0_15 = arith.constant 0 : index
    %30 = vector.load %arg6[%c1, %c0_14, %c0_15] : memref<8x16x128xbf16, #tpu.memory_space<vmem>>, vector<1x16x128xbf16>
    %31 = vector.shape_cast %30 : vector<1x16x128xbf16> to vector<16x128xbf16>
    %32 = vector.shape_cast %29 : vector<16x128xbf16> to vector<1x16x128xbf16>
    tpu.vector_store %arg6[%c1, %c0_14, %c0_15], %32 {strides = array<i32>} : memref<8x16x128xbf16, #tpu.memory_space<vmem>>, vector<1x16x128xbf16>,
    %cst_16 = arith.constant 9.990000e-01 : f32
    %33 = vector.broadcast %cst_16 : f32 to vector<16x128xf32>
    %34 = arith.subf %24, %33 : vector<16x128xf32>
    %35 = arith.select %26, %34, %24 : vector<16x128xi1>, vector<16x128xf32>
    %36 = arith.addf %35, %10 : vector<16x128xf32>
    %cst_17 = arith.constant 9.990000e-01 : f32
    %37 = vector.broadcast %cst_17 : f32 to vector<16x128xf32>
    %38 = arith.cmpf ogt, %36, %37 : vector<16x128xf32>
    %39 = arith.extui %38 : vector<16x128xi1> to vector<16x128xi32>
    %40 = arith.sitofp %39 : vector<16x128xi32> to vector<16x128xf32>
    %41 = arith.truncf %40 : vector<16x128xf32> to vector<16x128xbf16>
    %c2 = arith.constant 2 : index
    %c0_18 = arith.constant 0 : index
    %c0_19 = arith.constant 0 : index
    %42 = vector.load %arg6[%c2, %c0_18, %c0_19] : memref<8x16x128xbf16, #tpu.memory_space<vmem>>, vector<1x16x128xbf16>
    %43 = vector.shape_cast %42 : vector<1x16x128xbf16> to vector<16x128xbf16>
    %44 = vector.shape_cast %41 : vector<16x128xbf16> to vector<1x16x128xbf16>
    tpu.vector_store %arg6[%c2, %c0_18, %c0_19], %44 {strides = array<i32>} : memref<8x16x128xbf16, #tpu.memory_space<vmem>>, vector<1x16x128xbf16>,
    %cst_20 = arith.constant 9.990000e-01 : f32
    %45 = vector.broadcast %cst_20 : f32 to vector<16x128xf32>
    %46 = arith.subf %36, %45 : vector<16x128xf32>
    %47 = arith.select %38, %46, %36 : vector<16x128xi1>, vector<16x128xf32>
    %48 = arith.addf %47, %10 : vector<16x128xf32>
    %cst_21 = arith.constant 9.990000e-01 : f32
    %49 = vector.broadcast %cst_21 : f32 to vector<16x128xf32>
    %50 = arith.cmpf ogt, %48, %49 : vector<16x128xf32>
    %51 = arith.extui %50 : vector<16x128xi1> to vector<16x128xi32>
    %52 = arith.sitofp %51 : vector<16x128xi32> to vector<16x128xf32>
    %53 = arith.truncf %52 : vector<16x128xf32> to vector<16x128xbf16>
    %c3 = arith.constant 3 : index
    %c0_22 = arith.constant 0 : index
    %c0_23 = arith.constant 0 : index
    %54 = vector.load %arg6[%c3, %c0_22, %c0_23] : memref<8x16x128xbf16, #tpu.memory_space<vmem>>, vector<1x16x128xbf16>
    %55 = vector.shape_cast %54 : vector<1x16x128xbf16> to vector<16x128xbf16>
    %56 = vector.shape_cast %53 : vector<16x128xbf16> to vector<1x16x128xbf16>
    tpu.vector_store %arg6[%c3, %c0_22, %c0_23], %56 {strides = array<i32>} : memref<8x16x128xbf16, #tpu.memory_space<vmem>>, vector<1x16x128xbf16>,
    %cst_24 = arith.constant 9.990000e-01 : f32
    %57 = vector.broadcast %cst_24 : f32 to vector<16x128xf32>
    %58 = arith.subf %48, %57 : vector<16x128xf32>
    %59 = arith.select %50, %58, %48 : vector<16x128xi1>, vector<16x128xf32>
    %60 = arith.addf %59, %10 : vector<16x128xf32>
    %cst_25 = arith.constant 9.990000e-01 : f32
    %61 = vector.broadcast %cst_25 : f32 to vector<16x128xf32>
    %62 = arith.cmpf ogt, %60, %61 : vector<16x128xf32>
    %63 = arith.extui %62 : vector<16x128xi1> to vector<16x128xi32>
    %64 = arith.sitofp %63 : vector<16x128xi32> to vector<16x128xf32>
    %65 = arith.truncf %64 : vector<16x128xf32> to vector<16x128xbf16>
    %c4 = arith.constant 4 : index
    %c0_26 = arith.constant 0 : index
    %c0_27 = arith.constant 0 : index
    %66 = vector.load %arg6[%c4, %c0_26, %c0_27] : memref<8x16x128xbf16, #tpu.memory_space<vmem>>, vector<1x16x128xbf16>
    %67 = vector.shape_cast %66 : vector<1x16x128xbf16> to vector<16x128xbf16>
    %68 = vector.shape_cast %65 : vector<16x128xbf16> to vector<1x16x128xbf16>
    tpu.vector_store %arg6[%c4, %c0_26, %c0_27], %68 {strides = array<i32>} : memref<8x16x128xbf16, #tpu.memory_space<vmem>>, vector<1x16x128xbf16>,
    %cst_28 = arith.constant 9.990000e-01 : f32
    %69 = vector.broadcast %cst_28 : f32 to vector<16x128xf32>
    %70 = arith.subf %60, %69 : vector<16x128xf32>
    %71 = arith.select %62, %70, %60 : vector<16x128xi1>, vector<16x128xf32>
    %72 = arith.addf %71, %10 : vector<16x128xf32>
    %cst_29 = arith.constant 9.990000e-01 : f32
    %73 = vector.broadcast %cst_29 : f32 to vector<16x128xf32>
    %74 = arith.cmpf ogt, %72, %73 : vector<16x128xf32>
    %75 = arith.extui %74 : vector<16x128xi1> to vector<16x128xi32>
    %76 = arith.sitofp %75 : vector<16x128xi32> to vector<16x128xf32>
    %77 = arith.truncf %76 : vector<16x128xf32> to vector<16x128xbf16>
    %c5 = arith.constant 5 : index
    %c0_30 = arith.constant 0 : index
    %c0_31 = arith.constant 0 : index
    %78 = vector.load %arg6[%c5, %c0_30, %c0_31] : memref<8x16x128xbf16, #tpu.memory_space<vmem>>, vector<1x16x128xbf16>
    %79 = vector.shape_cast %78 : vector<1x16x128xbf16> to vector<16x128xbf16>
    %80 = vector.shape_cast %77 : vector<16x128xbf16> to vector<1x16x128xbf16>
    tpu.vector_store %arg6[%c5, %c0_30, %c0_31], %80 {strides = array<i32>} : memref<8x16x128xbf16, #tpu.memory_space<vmem>>, vector<1x16x128xbf16>,
    %cst_32 = arith.constant 9.990000e-01 : f32
    %81 = vector.broadcast %cst_32 : f32 to vector<16x128xf32>
    %82 = arith.subf %72, %81 : vector<16x128xf32>
    %83 = arith.select %74, %82, %72 : vector<16x128xi1>, vector<16x128xf32>
    %84 = arith.addf %83, %10 : vector<16x128xf32>
    %cst_33 = arith.constant 9.990000e-01 : f32
    %85 = vector.broadcast %cst_33 : f32 to vector<16x128xf32>
    %86 = arith.cmpf ogt, %84, %85 : vector<16x128xf32>
    %87 = arith.extui %86 : vector<16x128xi1> to vector<16x128xi32>
    %88 = arith.sitofp %87 : vector<16x128xi32> to vector<16x128xf32>
    %89 = arith.truncf %88 : vector<16x128xf32> to vector<16x128xbf16>
    %c6 = arith.constant 6 : index
    %c0_34 = arith.constant 0 : index
    %c0_35 = arith.constant 0 : index
    %90 = vector.load %arg6[%c6, %c0_34, %c0_35] : memref<8x16x128xbf16, #tpu.memory_space<vmem>>, vector<1x16x128xbf16>
    %91 = vector.shape_cast %90 : vector<1x16x128xbf16> to vector<16x128xbf16>
    %92 = vector.shape_cast %89 : vector<16x128xbf16> to vector<1x16x128xbf16>
    tpu.vector_store %arg6[%c6, %c0_34, %c0_35], %92 {strides = array<i32>} : memref<8x16x128xbf16, #tpu.memory_space<vmem>>, vector<1x16x128xbf16>,
    %cst_36 = arith.constant 9.990000e-01 : f32
    %93 = vector.broadcast %cst_36 : f32 to vector<16x128xf32>
    %94 = arith.subf %84, %93 : vector<16x128xf32>
    %95 = arith.select %86, %94, %84 : vector<16x128xi1>, vector<16x128xf32>
    %96 = arith.addf %95, %10 : vector<16x128xf32>
    %cst_37 = arith.constant 9.990000e-01 : f32
    %97 = vector.broadcast %cst_37 : f32 to vector<16x128xf32>
    %98 = arith.cmpf ogt, %96, %97 : vector<16x128xf32>
    %99 = arith.extui %98 : vector<16x128xi1> to vector<16x128xi32>
    %100 = arith.sitofp %99 : vector<16x128xi32> to vector<16x128xf32>
    %101 = arith.truncf %100 : vector<16x128xf32> to vector<16x128xbf16>
    %c7 = arith.constant 7 : index
    %c0_38 = arith.constant 0 : index
    %c0_39 = arith.constant 0 : index
    %102 = vector.load %arg6[%c7, %c0_38, %c0_39] : memref<8x16x128xbf16, #tpu.memory_space<vmem>>, vector<1x16x128xbf16>
    %103 = vector.shape_cast %102 : vector<1x16x128xbf16> to vector<16x128xbf16>
    %104 = vector.shape_cast %101 : vector<16x128xbf16> to vector<1x16x128xbf16>
    tpu.vector_store %arg6[%c7, %c0_38, %c0_39], %104 {strides = array<i32>} : memref<8x16x128xbf16, #tpu.memory_space<vmem>>, vector<1x16x128xbf16>,
    return
  }
  func.func @transform_0(%arg0: i32, %arg1: i32) -> (i32, i32) {
    %c0_i32 = arith.constant 0 : i32
    %c0_i32_0 = arith.constant 0 : i32
    return %arg1, %c0_i32 : i32, i32
  }
  func.func @transform_1(%arg0: i32, %arg1: i32) -> (i32, i32) {
    %c0_i32 = arith.constant 0 : i32
    %c0_i32_0 = arith.constant 0 : i32
    return %c0_i32, %arg0 : i32, i32
  }
  func.func @transform_2(%arg0: i32, %arg1: i32) -> (i32, i32) {
    %c0_i32 = arith.constant 0 : i32
    %c0_i32_0 = arith.constant 0 : i32
    return %c0_i32, %arg0 : i32, i32
  }
  func.func @transform_3(%arg0: i32, %arg1: i32) -> (i32, i32) {
    %c0_i32 = arith.constant 0 : i32
    %c0_i32_0 = arith.constant 0 : i32
    return %c0_i32, %arg0 : i32, i32
  }
  func.func @transform_4(%arg0: i32, %arg1: i32) -> (i32, i32, i32) {
    %c0_i32 = arith.constant 0 : i32
    %c0_i32_0 = arith.constant 0 : i32
    return %c0_i32, %arg1, %arg0 : i32, i32, i32
  }
}

</mosaic_0001>

<llo_original>
// kernel: tpu_custom_call.1
$region0: #{tpu_custom_call.1}
  #allocation0 [shape = 'u32[]', space=smem, size = 0x4, offset = 0x4, fixed_abs, tag = 'smem constant byte address 0x4 - core index']
  #allocation1 [shape = 'u32[72,128]{1,0:T(1,128)}', space=vmem, size = 0x9000, scoped, tag = 'internal scratch']
  %s0 = inlined_call_operand.vmem [shape: f32[16,4], index: 0, kind: input, shape index: {}]
  %s1 = inlined_call_operand.vmem [shape: f32[4,128], index: 1, kind: input, shape index: {}]
  %s2 = inlined_call_operand.vmem [shape: f32[1,128], index: 2, kind: input, shape index: {}]
  %s3 = inlined_call_operand.vmem [shape: f32[1,128], index: 3, kind: input, shape index: {}]
  %s4 = inlined_call_operand.hbm [shape: bf16[8,16,128], index: 4, kind: output, shape index: {}]
  %s5 = sld [smem:[#allocation0]]
  $region26: #{tpu_custom_call.1} parent=0
    _
  %s7 = ssub.s32 1, %s5
  %s8 = scalar_select 0, %s7, %s5
  $region1: #{tpu_custom_call.1} parent=0
    #allocation2 [shape = 'u8[32768]{0}', space=vmem, size = 0x8000, scoped, tag = 'output window, operand 0, single buffered']
    #allocation3 [shape = 's32[1]{0}', space=sflag, size = 0x4, scoped, tag = 'scoped memory for tpu_custom_call.1']
    %9 = vsyncpa [#allocation3], 0
    // Predicated region
    $region2: #{tpu_custom_call.1} parent=1 // pred_check
      _
    $region3: #{tpu_custom_call.1} parent=1 // pred_check_branch
      %11 = sbr.rel (0) target = $region5
    $region4: #{tpu_custom_call.1} parent=1 // pred_region
      _
    $region5: #{tpu_custom_call.1} parent=1 // pred_fallthru
      _
    // Predicated region
    $region6: #{tpu_custom_call.1} parent=1 // pred_check
      _
    $region7: #{tpu_custom_call.1} parent=1 // pred_check_branch
      %13 = sbr.rel (0) target = $region9
    $region8: #{tpu_custom_call.1} parent=1 // pred_region
      _
    $region9: #{tpu_custom_call.1} parent=1 // pred_fallthru
      _
    // Predicated region
    $region10: #{tpu_custom_call.1} parent=1 // pred_check
      _
    $region11: #{tpu_custom_call.1} parent=1 // pred_check_branch
      %15 = sbr.rel (0) target = $region13
    $region12: #{tpu_custom_call.1} parent=1 // pred_region
      _
    $region13: #{tpu_custom_call.1} parent=1 // pred_fallthru
      _
    // Predicated region
    $region14: #{tpu_custom_call.1} parent=1 // pred_check
      _
    $region15: #{tpu_custom_call.1} parent=1 // pred_check_branch
      %17 = sbr.rel (0) target = $region17
    $region16: #{tpu_custom_call.1} parent=1 // pred_region
      _
    $region17: #{tpu_custom_call.1} parent=1 // pred_fallthru
      _
    %v18 = vld [vmem:[%s0] sm:$0xff]
    %v19 = vld [vmem:[%s0 + $0x8] sm:$0xff]
    %v20 = vld [vmem:[%s1] sm:$0xf]
    %vm21 = vcmask 31744
    %v23 = vsel %vm21, %v18, 0
    %v26 = vsel %vm21, %v19, 0
    %vm28 = vcmask 1043456
    %v30 = vsel %vm28, %v20, 0
    %32 = vmatpush.msra.mxu0 0.0
    %33 = vmatpush.msra.mxu0 0.0
    %34 = vmatpush.msra.mxu0 0.0
    %35 = vmatpush.msra.mxu0 0.0
    %36 = vmatpush.msra.mxu0 0.0
    %37 = vmatpush.msra.mxu0 0.0
    %38 = vmatpush.msra.mxu0 0.0
    %39 = vmatpush.msra.mxu0 0.0
    %40 = vmatpush.msra.mxu0 0.0
    %41 = vmatpush.msra.mxu0 0.0
    %42 = vmatpush.msra.mxu0 0.0
    %43 = vmatpush.msra.mxu0 0.0
    %44 = vmatpush.msra.mxu0 0.0
    %45 = vmatpush.msra.mxu0 0.0
    %46 = vmatpush.msra.mxu0 0.0
    %v47 = vand.u32 %v30, 4294901760
    %48 = vmatpush.msra.mxu0 %v47
    %v49 = vand.u32 %v23, 4294901760
    %v50 = vsub.f32 %v23, %v49
    %v51 = vand.u32 %v50, 4294901760
    %v52 = vsub.f32 %v50, %v51
    %v53 = vand.u32 %v52, 4294901760
    %54 = vmatmul.f32.gmra.mxu0 %v53
    %v55 = vpop.f32.mrf.mxu0
    %v56 = vadd.f32 0.0, %v55
    %v57 = vand.u32 %v26, 4294901760
    %v58 = vsub.f32 %v26, %v57
    %v59 = vand.u32 %v58, 4294901760
    %v60 = vsub.f32 %v58, %v59
    %v61 = vand.u32 %v60, 4294901760
    %62 = vmatmul.f32.gmra.mxu0 %v61
    %v63 = vpop.f32.mrf.mxu0
    %v64 = vadd.f32 0.0, %v63
    %65 = vdwg.mxu0
    %66 = vmatpush.msra.mxu0 0.0
    %67 = vmatpush.msra.mxu0 0.0
    %68 = vmatpush.msra.mxu0 0.0
    %69 = vmatpush.msra.mxu0 0.0
    %70 = vmatpush.msra.mxu0 0.0
    %71 = vmatpush.msra.mxu0 0.0
    %72 = vmatpush.msra.mxu0 0.0
    %73 = vmatpush.msra.mxu0 0.0
    %74 = vmatpush.msra.mxu0 0.0
    %75 = vmatpush.msra.mxu0 0.0
    %76 = vmatpush.msra.mxu0 0.0
    %77 = vmatpush.msra.mxu0 0.0
    %78 = vmatpush.msra.mxu0 0.0
    %79 = vmatpush.msra.mxu0 0.0
    %80 = vmatpush.msra.mxu0 0.0
    %v81 = vand.u32 %v30, 4294901760
    %v82 = vsub.f32 %v30, %v81
    %v83 = vand.u32 %v82, 4294901760
    %v84 = vsub.f32 %v82, %v83
    %v85 = vand.u32 %v84, 4294901760
    %86 = vmatpush.msra.mxu0 %v85
    %v87 = vand.u32 %v23, 4294901760
    %88 = vmatmul.f32.gmra.mxu0 %v87
    %v89 = vpop.f32.mrf.mxu0
    %v90 = vadd.f32 %v56, %v89
    %v91 = vand.u32 %v26, 4294901760
    %92 = vmatmul.f32.gmra.mxu0 %v91
    %v93 = vpop.f32.mrf.mxu0
    %v94 = vadd.f32 %v64, %v93
    %95 = vdwg.mxu0
    %96 = vmatpush.msra.mxu0 0.0
    %97 = vmatpush.msra.mxu0 0.0
    %98 = vmatpush.msra.mxu0 0.0
    %99 = vmatpush.msra.mxu0 0.0
    %100 = vmatpush.msra.mxu0 0.0
    %101 = vmatpush.msra.mxu0 0.0
    %102 = vmatpush.msra.mxu0 0.0
    %103 = vmatpush.msra.mxu0 0.0
    %104 = vmatpush.msra.mxu0 0.0
    %105 = vmatpush.msra.mxu0 0.0
    %106 = vmatpush.msra.mxu0 0.0
    %107 = vmatpush.msra.mxu0 0.0
    %108 = vmatpush.msra.mxu0 0.0
    %109 = vmatpush.msra.mxu0 0.0
    %110 = vmatpush.msra.mxu0 0.0
    %v111 = vand.u32 %v30, 4294901760
    %v112 = vsub.f32 %v30, %v111
    %113 = vmatpush.msra.mxu0 %v112
    %v114 = vand.u32 %v23, 4294901760
    %v115 = vsub.f32 %v23, %v114
    %116 = vmatmul.f32.gmra.mxu0 %v115
    %v117 = vpop.f32.mrf.mxu0
    %v118 = vadd.f32 %v90, %v117
    %v119 = vand.u32 %v26, 4294901760
    %v120 = vsub.f32 %v26, %v119
    %121 = vmatmul.f32.gmra.mxu0 %v120
    %v122 = vpop.f32.mrf.mxu0
    %v123 = vadd.f32 %v94, %v122
    %124 = vdwg.mxu0
    %125 = vmatpush.msra.mxu0 0.0
    %126 = vmatpush.msra.mxu0 0.0
    %127 = vmatpush.msra.mxu0 0.0
    %128 = vmatpush.msra.mxu0 0.0
    %129 = vmatpush.msra.mxu0 0.0
    %130 = vmatpush.msra.mxu0 0.0
    %131 = vmatpush.msra.mxu0 0.0
    %132 = vmatpush.msra.mxu0 0.0
    %133 = vmatpush.msra.mxu0 0.0
    %134 = vmatpush.msra.mxu0 0.0
    %135 = vmatpush.msra.mxu0 0.0
    %136 = vmatpush.msra.mxu0 0.0
    %137 = vmatpush.msra.mxu0 0.0
    %138 = vmatpush.msra.mxu0 0.0
    %139 = vmatpush.msra.mxu0 0.0
    %v140 = vand.u32 %v30, 4294901760
    %141 = vmatpush.msra.mxu0 %v140
    %v142 = vand.u32 %v23, 4294901760
    %v143 = vsub.f32 %v23, %v142
    %v144 = vand.u32 %v143, 4294901760
    %145 = vmatmul.f32.gmra.mxu0 %v144
    %v146 = vpop.f32.mrf.mxu0
    %v147 = vadd.f32 %v118, %v146
    %v148 = vand.u32 %v26, 4294901760
    %v149 = vsub.f32 %v26, %v148
    %v150 = vand.u32 %v149, 4294901760
    %151 = vmatmul.f32.gmra.mxu0 %v150
    %v152 = vpop.f32.mrf.mxu0
    %v153 = vadd.f32 %v123, %v152
    %154 = vdwg.mxu0
    %155 = vmatpush.msra.mxu0 0.0
    %156 = vmatpush.msra.mxu0 0.0
    %157 = vmatpush.msra.mxu0 0.0
    %158 = vmatpush.msra.mxu0 0.0
    %159 = vmatpush.msra.mxu0 0.0
    %160 = vmatpush.msra.mxu0 0.0
    %161 = vmatpush.msra.mxu0 0.0
    %162 = vmatpush.msra.mxu0 0.0
    %163 = vmatpush.msra.mxu0 0.0
    %164 = vmatpush.msra.mxu0 0.0
    %165 = vmatpush.msra.mxu0 0.0
    %166 = vmatpush.msra.mxu0 0.0
    %167 = vmatpush.msra.mxu0 0.0
    %168 = vmatpush.msra.mxu0 0.0
    %169 = vmatpush.msra.mxu0 0.0
    %v170 = vand.u32 %v30, 4294901760
    %v171 = vsub.f32 %v30, %v170
    %v172 = vand.u32 %v171, 4294901760
    %173 = vmatpush.msra.mxu0 %v172
    %v174 = vand.u32 %v23, 4294901760
    %175 = vmatmul.f32.gmra.mxu0 %v174
    %v176 = vpop.f32.mrf.mxu0
    %v177 = vadd.f32 %v147, %v176
    %v178 = vand.u32 %v26, 4294901760
    %179 = vmatmul.f32.gmra.mxu0 %v178
    %v180 = vpop.f32.mrf.mxu0
    %v181 = vadd.f32 %v153, %v180
    %182 = vdwg.mxu0
    %183 = vmatpush.msra.mxu0 0.0
    %184 = vmatpush.msra.mxu0 0.0
    %185 = vmatpush.msra.mxu0 0.0
    %186 = vmatpush.msra.mxu0 0.0
    %187 = vmatpush.msra.mxu0 0.0
    %188 = vmatpush.msra.mxu0 0.0
    %189 = vmatpush.msra.mxu0 0.0
    %190 = vmatpush.msra.mxu0 0.0
    %191 = vmatpush.msra.mxu0 0.0
    %192 = vmatpush.msra.mxu0 0.0
    %193 = vmatpush.msra.mxu0 0.0
    %194 = vmatpush.msra.mxu0 0.0
    %195 = vmatpush.msra.mxu0 0.0
    %196 = vmatpush.msra.mxu0 0.0
    %197 = vmatpush.msra.mxu0 0.0
    %v198 = vand.u32 %v30, 4294901760
    %199 = vmatpush.msra.mxu0 %v198
    %v200 = vand.u32 %v23, 4294901760
    %201 = vmatmul.f32.gmra.mxu0 %v200
    %v202 = vpop.f32.mrf.mxu0
    %v203 = vadd.f32 %v177, %v202
    %v204 = vand.u32 %v26, 4294901760
    %205 = vmatmul.f32.gmra.mxu0 %v204
    %v206 = vpop.f32.mrf.mxu0
    %v207 = vadd.f32 %v181, %v206
    %208 = vdwg.mxu0
    %v209 = vld [vmem:[%s2] sm:$0x1]
    %v211 = vperm.slane %v209, 0
    %v213 = vsub.f32 %v203, %v211
    %v214 = vsub.f32 %v207, %v211
    %v215 = vmul.f32 %v213, %v213
    %v216 = vmul.f32 %v214, %v214
    %v217 = vld [vmem:[%s3] sm:$0x1]
    %v219 = vperm.slane %v217, 0
    %v221 = vmul.f32 %v215, %v219
    %v222 = vmul.f32 %v216, %v219
    %v223 = vmul.f32 %v221, 1.442695
    %v224 = vpow.pop %v223
    %v225 = vmul.f32 %v222, 1.442695
    %v226 = vpow.pop %v225
    %v227 = vadd.f32 %v224, 0.0
    %v228 = vadd.f32 %v226, 0.0
    %vm229 = vcmp.gt.f32.partialorder %v227, 0.999
    %vm230 = vcmp.gt.f32.partialorder %v228, 0.999
    %v231 = vsel %vm229, 1, 0
    %v232 = vsel %vm230, 1, 0
    %v233 = vcvt.s32.f32 %v231
    %v234 = vcvt.s32.f32 %v232
    %v235 = vpack.c.bf16 %v233, %v233
    %v236 = vpack.c.bf16 %v234, %v234
    %237 = vst [vmem:[#allocation2] sm:$0xf] %v235
    %238 = vst [vmem:[#allocation2 + $0x4] sm:$0xf] %v236
    %v239 = vsub.f32 %v227, 0.999
    %v240 = vsub.f32 %v228, 0.999
    %v241 = vsel %vm229, %v239, %v227
    %v242 = vsel %vm230, %v240, %v228
    %v243 = vadd.f32 %v241, %v224
    %v244 = vadd.f32 %v242, %v226
    %vm245 = vcmp.gt.f32.partialorder %v243, 0.999
    %vm246 = vcmp.gt.f32.partialorder %v244, 0.999
    %v247 = vsel %vm245, 1, 0
    %v248 = vsel %vm246, 1, 0
    %v249 = vcvt.s32.f32 %v247
    %v250 = vcvt.s32.f32 %v248
    %v251 = vpack.c.bf16 %v249, %v249
    %v252 = vpack.c.bf16 %v250, %v250
    %s253 = scalar_lea.vmem [#allocation2], 8
    %254 = vst [vmem:[%s253] sm:$0xf] %v251
    %255 = vst [vmem:[%s253 + $0x4] sm:$0xf] %v252
    %v256 = vsub.f32 %v243, 0.999
    %v257 = vsub.f32 %v244, 0.999
    %v258 = vsel %vm245, %v256, %v243
    %v259 = vsel %vm246, %v257, %v244
    %v260 = vadd.f32 %v258, %v224
    %v261 = vadd.f32 %v259, %v226
    %vm262 = vcmp.gt.f32.partialorder %v260, 0.999
    %vm263 = vcmp.gt.f32.partialorder %v261, 0.999
    %v264 = vsel %vm262, 1, 0
    %v265 = vsel %vm263, 1, 0
    %v266 = vcvt.s32.f32 %v264
    %v267 = vcvt.s32.f32 %v265
    %v268 = vpack.c.bf16 %v266, %v266
    %v269 = vpack.c.bf16 %v267, %v267
    %s270 = scalar_lea.vmem [#allocation2], 16
    %271 = vst [vmem:[%s270] sm:$0xf] %v268
    %272 = vst [vmem:[%s270 + $0x4] sm:$0xf] %v269
    %v273 = vsub.f32 %v260, 0.999
    %v274 = vsub.f32 %v261, 0.999
    %v275 = vsel %vm262, %v273, %v260
    %v276 = vsel %vm263, %v274, %v261
    %v277 = vadd.f32 %v275, %v224
    %v278 = vadd.f32 %v276, %v226
    %vm279 = vcmp.gt.f32.partialorder %v277, 0.999
    %vm280 = vcmp.gt.f32.partialorder %v278, 0.999
    %v281 = vsel %vm279, 1, 0
    %v282 = vsel %vm280, 1, 0
    %v283 = vcvt.s32.f32 %v281
    %v284 = vcvt.s32.f32 %v282
    %v285 = vpack.c.bf16 %v283, %v283
    %v286 = vpack.c.bf16 %v284, %v284
    %s287 = scalar_lea.vmem [#allocation2], 24
    %288 = vst [vmem:[%s287] sm:$0xf] %v285
    %289 = vst [vmem:[%s287 + $0x4] sm:$0xf] %v286
    %v290 = vsub.f32 %v277, 0.999
    %v291 = vsub.f32 %v278, 0.999
    %v292 = vsel %vm279, %v290, %v277
    %v293 = vsel %vm280, %v291, %v278
    %v294 = vadd.f32 %v292, %v224
    %v295 = vadd.f32 %v293, %v226
    %vm296 = vcmp.gt.f32.partialorder %v294, 0.999
    %vm297 = vcmp.gt.f32.partialorder %v295, 0.999
    %v298 = vsel %vm296, 1, 0
    %v299 = vsel %vm297, 1, 0
    %v300 = vcvt.s32.f32 %v298
    %v301 = vcvt.s32.f32 %v299
    %v302 = vpack.c.bf16 %v300, %v300
    %v303 = vpack.c.bf16 %v301, %v301
    %s304 = scalar_lea.vmem [#allocation2], 32
    %305 = vst [vmem:[%s304] sm:$0xf] %v302
    %306 = vst [vmem:[%s304 + $0x4] sm:$0xf] %v303
    %v307 = vsub.f32 %v294, 0.999
    %v308 = vsub.f32 %v295, 0.999
    %v309 = vsel %vm296, %v307, %v294
    %v310 = vsel %vm297, %v308, %v295
    %v311 = vadd.f32 %v309, %v224
    %v312 = vadd.f32 %v310, %v226
    %vm313 = vcmp.gt.f32.partialorder %v311, 0.999
    %vm314 = vcmp.gt.f32.partialorder %v312, 0.999
    %v315 = vsel %vm313, 1, 0
    %v316 = vsel %vm314, 1, 0
    %v317 = vcvt.s32.f32 %v315
    %v318 = vcvt.s32.f32 %v316
    %v319 = vpack.c.bf16 %v317, %v317
    %v320 = vpack.c.bf16 %v318, %v318
    %s321 = scalar_lea.vmem [#allocation2], 40
    %322 = vst [vmem:[%s321] sm:$0xf] %v319
    %323 = vst [vmem:[%s321 + $0x4] sm:$0xf] %v320
    %v324 = vsub.f32 %v311, 0.999
    %v325 = vsub.f32 %v312, 0.999
    %v326 = vsel %vm313, %v324, %v311
    %v327 = vsel %vm314, %v325, %v312
    %v328 = vadd.f32 %v326, %v224
    %v329 = vadd.f32 %v327, %v226
    %vm330 = vcmp.gt.f32.partialorder %v328, 0.999
    %vm331 = vcmp.gt.f32.partialorder %v329, 0.999
    %v332 = vsel %vm330, 1, 0
    %v333 = vsel %vm331, 1, 0
    %v334 = vcvt.s32.f32 %v332
    %v335 = vcvt.s32.f32 %v333
    %v336 = vpack.c.bf16 %v334, %v334
    %v337 = vpack.c.bf16 %v335, %v335
    %s338 = scalar_lea.vmem [#allocation2], 48
    %339 = vst [vmem:[%s338] sm:$0xf] %v336
    %340 = vst [vmem:[%s338 + $0x4] sm:$0xf] %v337
    %v341 = vsub.f32 %v328, 0.999
    %v342 = vsub.f32 %v329, 0.999
    %v343 = vsel %vm330, %v341, %v328
    %v344 = vsel %vm331, %v342, %v329
    %v345 = vadd.f32 %v343, %v224
    %v346 = vadd.f32 %v344, %v226
    %vm347 = vcmp.gt.f32.partialorder %v345, 0.999
    %vm348 = vcmp.gt.f32.partialorder %v346, 0.999
    %v349 = vsel %vm347, 1, 0
    %v350 = vsel %vm348, 1, 0
    %v351 = vcvt.s32.f32 %v349
    %v352 = vcvt.s32.f32 %v350
    %v353 = vpack.c.bf16 %v351, %v351
    %v354 = vpack.c.bf16 %v352, %v352
    %s355 = scalar_lea.vmem [#allocation2], 56
    %356 = vst [vmem:[%s355] sm:$0xf] %v353
    %357 = vst [vmem:[%s355 + $0x4] sm:$0xf] %v354
    // Predicated region
    $region18: #{tpu_custom_call.1} parent=1 // pred_check
      _
    $region19: #{tpu_custom_call.1} parent=1 // pred_check_branch
      %359 = sbr.rel (0) target = $region21
    $region20: #{tpu_custom_call.1} parent=1 // pred_region
      %361 = vsyncadd [#allocation3], 0
      %s362 = sshll.u32 [#allocation2], 4
      %s363 = int_to_ptr.vmem [resolvable:$true] %s362
      %s364 = sshll.u32 %s4, 4
      %s365 = int_to_ptr.hbm [resolvable:$true] %s364
      %370 = dma.vmem_to_hbm [thread:$0]  %s363, 1024, %s365, [#allocation3], 64, 64, 4
    $region21: #{tpu_custom_call.1} parent=1 // pred_fallthru
      _
    // Predicated region
    $region22: #{tpu_custom_call.1} parent=1 // pred_check
      _
    $region23: #{tpu_custom_call.1} parent=1 // pred_check_branch
      %372 = sbr.rel (0) target = $region25
    $region24: #{tpu_custom_call.1} parent=1 // pred_region
      %374 = dma.done [#allocation3], 1024
    $region25: #{tpu_custom_call.1} parent=1 // pred_fallthru
      _
    %375 = vsyncpa [#allocation3], 1

</llo_original>
